<compile_context>
chip_gen: v7x
topology: tpu7x:2x2x1
jax: 0.10.0
libtpu: 0.0.40
codegen_flags: <defaults>
</compile_context>

<pallas_src>
import functools

import jax
import jax.numpy as jnp
from jax import lax
from jax.experimental import pallas as pl
from jax.experimental.pallas import tpu as pltpu


# Safe on every generation: <= physical VMEM on v7x (64 MiB), raises the v5e
# scoped default (16 MiB), equals the v6e/v7x scoped default.
_VMEM_LIMIT_BYTES = 32 * 1024 * 1024
_TARGET_BLOCK_BYTES = 1 << 20  # ~1 MiB per input block (~85% of HBM roofline)


def _round_up(x, m):
    return ((x + m - 1) // m) * m


def _choose_tm(n_rows, n_cols, itemsize):
    """Row tile so that one (tm, C) block is ~1 MiB; the double-buffered
    working set (2-3 block arrays x 2 buffers) stays far below the 32 MiB
    scoped-VMEM budget on v5e/v6e/v7x."""
    tm = _TARGET_BLOCK_BYTES // max(1, n_cols * itemsize)
    tm = max(8, (tm // 8) * 8)              # sublane-aligned
    tm = min(tm, _round_up(n_rows, 8))      # no point exceeding the array
    return int(tm)


def _elementwise_qfl(x, t_logits, beta):
    """Elementwise KD quality focal loss, computed in f32."""
    x = x.astype(jnp.float32)
    t = jax.nn.sigmoid(t_logits.astype(jnp.float32))      # teacher probability
    # One shared EUP exp for BOTH the stable-BCE log term and sigmoid(pred).
    e = jnp.exp(-jnp.abs(x))
    # Stable BCE-with-logits (matches F.binary_cross_entropy_with_logits).
    bce = jnp.maximum(x, 0.0) - x * t + jnp.log1p(e)
    inv = 1.0 / (1.0 + e)
    sig_x = jnp.where(x >= 0, inv, e * inv)                # == sigmoid(x)
    diff = jnp.abs(sig_x - t)
    if beta == 1.0:
        fw = diff
    elif float(beta).is_integer() and 1 < beta <= 4:
        fw = diff                                          # VPU multiplies only
        for _ in range(int(beta) - 1):
            fw = fw * diff
    else:
        fw = diff ** beta
    return bce * fw


# ---------------------------------------------------------------------------
# Kernel 1: per-tile partial sums (used for 'mean' / 'sum').
# Grid axis is 'parallel' (each step writes its own (1,1) SMEM partial), so
# v7x can shard row tiles across both TensorCores.  Tail rows are masked.
# ---------------------------------------------------------------------------
def _qfl_partial_sum_kernel(pred_ref, tgt_ref, part_ref, *, beta, n_rows, tm):
    loss = _elementwise_qfl(pred_ref[...], tgt_ref[...], beta)
    if n_rows % tm != 0:
        row = pl.program_id(0) * tm + lax.broadcasted_iota(
            jnp.int32, loss.shape, 0)
        loss = jnp.where(row < n_rows, loss, 0.0)
    part_ref[0, 0] = jnp.sum(loss)


# ---------------------------------------------------------------------------
# Kernel 2: elementwise loss (reduction='none'), scaled by loss_weight.
# Out-of-bounds rows of the (possibly overhanging) last block are dropped by
# the Pallas write-back, so no masking is needed here.
# ---------------------------------------------------------------------------
def _qfl_none_kernel(pred_ref, tgt_ref, out_ref, *, beta, loss_weight):
    loss = _elementwise_qfl(pred_ref[...], tgt_ref[...], beta)
    out_ref[...] = (loss * jnp.float32(loss_weight)).astype(out_ref.dtype)


def kd_quality_focal_loss(pred, target, *, beta=1.0, loss_weight=1.0,
                          reduction="mean", avg_factor=None, tm=None):
    """Pallas implementation of KDQualityFocalLoss.forward (weight=None path).

    pred, target: (N, C) float arrays (target is teacher logits).
    """
    assert pred.shape == target.shape and pred.ndim == 2
    N, C = pred.shape
    itemsize = jnp.dtype(pred.dtype).itemsize

    compiler_params = pltpu.CompilerParams(
        dimension_semantics=("parallel",),
        vmem_limit_bytes=_VMEM_LIMIT_BYTES)

    if tm is None:
        tm = _choose_tm(N, C, itemsize)
    num_tiles = pl.cdiv(N, tm)
    grid = (num_tiles,)
    row_spec = pl.BlockSpec((tm, C), lambda i: (i, 0))

    if reduction == "none":
        return pl.pallas_call(
            functools.partial(_qfl_none_kernel, beta=beta,
                              loss_weight=loss_weight),
            out_shape=jax.ShapeDtypeStruct((N, C), pred.dtype),
            grid_spec=pltpu.PrefetchScalarGridSpec(
                num_scalar_prefetch=0,
                grid=grid,
                in_specs=[row_spec, row_spec],
                out_specs=pl.BlockSpec((tm, C), lambda i: (i, 0)),
            ),
            compiler_params=compiler_params,
        )(pred, target)

    if reduction == "mean":
        divisor = float(avg_factor) if avg_factor is not None else float(N * C)
    elif reduction == "sum":
        divisor = 1.0
    else:
        raise ValueError(f"unsupported reduction: {reduction}")
    scale = loss_weight / divisor

    partials = pl.pallas_call(
        functools.partial(_qfl_partial_sum_kernel, beta=beta, n_rows=N, tm=tm),
        out_shape=jax.ShapeDtypeStruct((num_tiles, 1), jnp.float32),
        grid_spec=pltpu.PrefetchScalarGridSpec(
            num_scalar_prefetch=0,
            grid=grid,
            in_specs=[row_spec, row_spec],
            out_specs=pl.BlockSpec((1, 1), lambda i: (i, 0),
                                   memory_space=pltpu.SMEM),
        ),
        compiler_params=compiler_params,
    )(pred, target)
    # Tiny final reduction + scaling stays in XLA (num_tiles scalars).
    return jnp.sum(partials) * jnp.float32(scale)


class KDQualityFocalLoss:
    """JAX/Pallas counterpart of the PyTorch module (use_sigmoid=True only)."""

    def __init__(self, use_sigmoid=True, beta=1.0, reduction="mean",
                 loss_weight=1.0):
        assert use_sigmoid is True, "Only sigmoid in QFL supported now."
        self.beta = beta
        self.reduction = reduction
        self.loss_weight = loss_weight

    def __call__(self, pred, target, weight=None, avg_factor=None,
                 reduction_override=None):
        assert reduction_override in (None, "none", "mean", "sum")
        reduction = reduction_override if reduction_override else self.reduction
        # TODO(synk): per-element `weight` broadcasting path not implemented
        # (the default forward call uses weight=None).
        assert weight is None
        return kd_quality_focal_loss(
            pred, target, beta=self.beta, loss_weight=self.loss_weight,
            reduction=reduction, avg_factor=avg_factor)


if __name__ == "__main__":
    key = jax.random.PRNGKey(0)
    k1, k2 = jax.random.split(key)
    N, C = 64, 128  # (N anchors, C classes)
    pred = jax.random.normal(k1, (N, C), dtype=jnp.float32) * 2.0
    target = jax.random.normal(k2, (N, C), dtype=jnp.float32) * 2.0

    def ref_loss(p, tl, beta=1.0, reduction="mean"):
        t = jax.nn.sigmoid(tl)
        bce = jnp.maximum(p, 0.0) - p * t + jnp.log1p(jnp.exp(-jnp.abs(p)))
        l = bce * jnp.abs(jax.nn.sigmoid(p) - t) ** beta
        if reduction == "mean":
            return jnp.mean(l)
        if reduction == "sum":
            return jnp.sum(l)
        return l

    # mean reduction, beta=1
    loss_mod = KDQualityFocalLoss(use_sigmoid=True, beta=1.0,
                                  reduction="mean", loss_weight=1.0)
    out_mean = jax.block_until_ready(loss_mod(pred, target))
    assert jnp.allclose(out_mean, ref_loss(pred, target),
                        rtol=1e-5, atol=1e-6), ("mean", out_mean)

    # sum reduction, beta=2 (integer fast path), loss_weight=0.5
    loss_mod2 = KDQualityFocalLoss(use_sigmoid=True, beta=2.0,
                                   reduction="sum", loss_weight=0.5)
    out_sum = jax.block_until_ready(loss_mod2(pred, target))
    ref_sum = 0.5 * ref_loss(pred, target, beta=2.0, reduction="sum")
    assert jnp.allclose(out_sum, ref_sum, rtol=1e-5, atol=1e-6), ("sum", out_sum)

    # reduction='none' with a ragged row count (exercises the tail handling)
    Nr = 52
    out_none = jax.block_until_ready(
        loss_mod(pred[:Nr], target[:Nr], reduction_override="none"))
    assert out_none.shape == (Nr, C)
    assert jnp.allclose(out_none,
                        ref_loss(pred[:Nr], target[:Nr], reduction="none"),
                        rtol=1e-5, atol=1e-6), "none"

    print("KERNEL_OK")
</pallas_src>

<mosaic_0001>
module attributes {stable_mosaic.version = 11 : i64} {
  func.func @_qfl_partial_sum_kernel(%arg0: i32, %arg1: memref<64x128xf32, #tpu.memory_space<vmem>>, %arg2: memref<64x128xf32, #tpu.memory_space<vmem>>, %arg3: memref<1x1xf32, #tpu.memory_space<smem>>) attributes {dimension_semantics = [#tpu.dimension_semantics<parallel>], iteration_bounds = array<i64: 1>, scalar_prefetch = 0 : i64, scratch_operands = 0 : i64, tpu.core_type = #tpu.core_type<tc>, window_params = [{transform_indices = @transform_0, window_bounds = array<i64: 64, 128>}, {transform_indices = @transform_1, window_bounds = array<i64: 64, 128>}, {transform_indices = @transform_2, window_bounds = array<i64: 1, 1>}]} {
    %c0 = arith.constant 0 : index
    %c0_0 = arith.constant 0 : index
    %0 = vector.load %arg1[%c0, %c0_0] : memref<64x128xf32, #tpu.memory_space<vmem>>, vector<64x128xf32>
    %c0_1 = arith.constant 0 : index
    %c0_2 = arith.constant 0 : index
    %1 = vector.load %arg2[%c0_1, %c0_2] : memref<64x128xf32, #tpu.memory_space<vmem>>, vector<64x128xf32>
    %2 = arith.negf %1 : vector<64x128xf32>
    %3 = math.exp %2 : vector<64x128xf32>
    %cst = arith.constant 1.000000e+00 : f32
    %4 = vector.broadcast %cst : f32 to vector<64x128xf32>
    %5 = arith.addf %4, %3 : vector<64x128xf32>
    %6 = arith.divf %4, %5 : vector<64x128xf32>
    %7 = math.absf %0 : vector<64x128xf32>
    %cst_3 = arith.constant 0.000000e+00 : f32
    %8 = vector.broadcast %cst_3 : f32 to vector<64x128xf32>
    %9 = arith.subf %8, %7 : vector<64x128xf32>
    %10 = math.exp %9 : vector<64x128xf32>
    %cst_4 = arith.constant 0.000000e+00 : f32
    %11 = vector.broadcast %cst_4 : f32 to vector<64x128xf32>
    %12 = arith.maximumf %0, %11 : vector<64x128xf32>
    %13 = arith.mulf %0, %6 : vector<64x128xf32>
    %14 = arith.subf %12, %13 : vector<64x128xf32>
    %15 = math.log1p %10 : vector<64x128xf32>
    %16 = arith.addf %14, %15 : vector<64x128xf32>
    %cst_5 = arith.constant 1.000000e+00 : f32
    %17 = vector.broadcast %cst_5 : f32 to vector<64x128xf32>
    %18 = arith.addf %17, %10 : vector<64x128xf32>
    %cst_6 = arith.constant 1.000000e+00 : f32
    %19 = vector.broadcast %cst_6 : f32 to vector<64x128xf32>
    %20 = arith.divf %19, %18 : vector<64x128xf32>
    %cst_7 = arith.constant 0.000000e+00 : f32
    %21 = vector.broadcast %cst_7 : f32 to vector<64x128xf32>
    %22 = arith.cmpf oge, %0, %21 : vector<64x128xf32>
    %23 = arith.mulf %10, %20 : vector<64x128xf32>
    %24 = arith.select %22, %20, %23 : vector<64x128xi1>, vector<64x128xf32>
    %25 = arith.subf %24, %6 : vector<64x128xf32>
    %26 = math.absf %25 : vector<64x128xf32>
    %27 = arith.mulf %16, %26 : vector<64x128xf32>
    %28 = vector.shape_cast %27 : vector<64x128xf32> to vector<1x64x128xf32>
    %cst_8 = arith.constant dense<0.000000e+00> : vector<1xf32>
    %29 = vector.multi_reduction <add>, %28, %cst_8 [1, 2] : vector<1x64x128xf32> to vector<1xf32>
    %30 = vector.shape_cast %29 : vector<1xf32> to vector<1x1x1xf32>
    %31 = vector.extract %30[0, 0, 0] : f32 from vector<1x1x1xf32>
    %c0_9 = arith.constant 0 : index
    %c0_10 = arith.constant 0 : index
    %32 = memref.load %arg3[%c0_9, %c0_10] : memref<1x1xf32, #tpu.memory_space<smem>>
    memref.store %31, %arg3[%c0_9, %c0_10] : memref<1x1xf32, #tpu.memory_space<smem>>
    return
  }
  func.func @transform_0(%arg0: i32) -> (i32, i32) {
    %c0_i32 = arith.constant 0 : i32
    %c0_i32_0 = arith.constant 0 : i32
    return %arg0, %c0_i32 : i32, i32
  }
  func.func @transform_1(%arg0: i32) -> (i32, i32) {
    %c0_i32 = arith.constant 0 : i32
    %c0_i32_0 = arith.constant 0 : i32
    return %arg0, %c0_i32 : i32, i32
  }
  func.func @transform_2(%arg0: i32) -> (i32, i32) {
    %c0_i32 = arith.constant 0 : i32
    %c0_i32_0 = arith.constant 0 : i32
    return %arg0, %c0_i32 : i32, i32
  }
}

</mosaic_0001>

<llo_original>
// kernel: tpu_custom_call.1
$region0: #{tpu_custom_call.1}
  #allocation0 [shape = 'u32[]', space=smem, size = 0x4, offset = 0x4, fixed_abs, tag = 'smem constant byte address 0x4 - core index']
  #allocation1 [shape = 'u32[144,128]{1,0:T(1,128)}', space=vmem, size = 0x12000, scoped, tag = 'internal scratch']
  %s0 = inlined_call_operand.hbm [shape: f32[64,128], index: 0, kind: input, shape index: {}]
  %s1 = inlined_call_operand.hbm [shape: f32[64,128], index: 1, kind: input, shape index: {}]
  %s2 = inlined_call_operand.hbm [shape: f32[1,1], index: 2, kind: output, shape index: {}]
  %s3 = sld [smem:[#allocation0]]
  $region26: #{tpu_custom_call.1} parent=0
    _
  %s5 = ssub.s32 1, %s3
  %s6 = scalar_select 0, %s5, %s3
  $region1: #{tpu_custom_call.1} parent=0
    #allocation2 [shape = 'u8[32768]{0}', space=vmem, size = 0x8000, scoped, tag = 'input window, operand 0, single buffered']
    #allocation3 [shape = 's32[1]{0}', space=sflag, size = 0x4, scoped, tag = 'scoped memory for tpu_custom_call.1']
    #allocation4 [shape = 's32[1]{0}', space=sflag, size = 0x4, scoped, tag = 'scoped memory for tpu_custom_call.1']
    #allocation5 [shape = 'u8[32768]{0}', space=vmem, size = 0x8000, scoped, tag = 'input window, operand 1, single buffered']
    #allocation6 [shape = 's32[1]{0}', space=sflag, size = 0x4, scoped, tag = 'scoped memory for tpu_custom_call.1']
    #allocation7 [shape = 'u8[512]{0}', space=smem, size = 0x200, scoped, tag = 'output window, operand 0, single buffered']
    %7 = vsyncpa [#allocation3], 0
    %8 = vsyncpa [#allocation6], 0
    %9 = vsyncpa [#allocation4], 0
    // Predicated region
    $region2: #{tpu_custom_call.1} parent=1 // pred_check
      _
    $region3: #{tpu_custom_call.1} parent=1 // pred_check_branch
      %11 = sbr.rel (0) target = $region5
    $region4: #{tpu_custom_call.1} parent=1 // pred_region
      %s13 = ssub.s32 1024, 1024
      %14 = vsyncadd [#allocation3], %s13
      %s15 = sshll.u32 [#allocation2], 4
      %s16 = int_to_ptr.vmem [resolvable:$true] %s15
      %21 = dma.hbm_to_vmem [thread:$0]  %s0, 1024, %s16, [#allocation3], 128, 128, 8
    $region5: #{tpu_custom_call.1} parent=1 // pred_fallthru
      _
    // Predicated region
    $region6: #{tpu_custom_call.1} parent=1 // pred_check
      _
    $region7: #{tpu_custom_call.1} parent=1 // pred_check_branch
      %23 = sbr.rel (0) target = $region9
    $region8: #{tpu_custom_call.1} parent=1 // pred_region
      %s25 = ssub.s32 1024, 1024
      %26 = vsyncadd [#allocation6], %s25
      %s27 = sshll.u32 [#allocation5], 4
      %s28 = int_to_ptr.vmem [resolvable:$true] %s27
      %33 = dma.hbm_to_vmem [thread:$0]  %s1, 1024, %s28, [#allocation6], 128, 128, 8
    $region9: #{tpu_custom_call.1} parent=1 // pred_fallthru
      _
    // Predicated region
    $region10: #{tpu_custom_call.1} parent=1 // pred_check
      _
    $region11: #{tpu_custom_call.1} parent=1 // pred_check_branch
      %35 = sbr.rel (0) target = $region13
    $region12: #{tpu_custom_call.1} parent=1 // pred_region
      %36 = dma.done [#allocation3], 1024
    $region13: #{tpu_custom_call.1} parent=1 // pred_fallthru
      _
    // Predicated region
    $region14: #{tpu_custom_call.1} parent=1 // pred_check
      _
    $region15: #{tpu_custom_call.1} parent=1 // pred_check_branch
      %38 = sbr.rel (0) target = $region17
    $region16: #{tpu_custom_call.1} parent=1 // pred_region
      %39 = dma.done [#allocation6], 1024
    $region17: #{tpu_custom_call.1} parent=1 // pred_fallthru
      _
    %v40 = vld [vmem:[#allocation2] sm:$0xff]
    %v41 = vld [vmem:[#allocation2 + $0x8] sm:$0xff]
    %v42 = vld [vmem:[#allocation2 + $0x10] sm:$0xff]
    %v43 = vld [vmem:[#allocation2 + $0x18] sm:$0xff]
    %v44 = vld [vmem:[#allocation2 + $0x20] sm:$0xff]
    %v45 = vld [vmem:[#allocation2 + $0x28] sm:$0xff]
    %v46 = vld [vmem:[#allocation2 + $0x30] sm:$0xff]
    %v47 = vld [vmem:[#allocation2 + $0x38] sm:$0xff]
    %v48 = vld [vmem:[#allocation5] sm:$0xff]
    %v49 = vld [vmem:[#allocation5 + $0x8] sm:$0xff]
    %v50 = vld [vmem:[#allocation5 + $0x10] sm:$0xff]
    %v51 = vld [vmem:[#allocation5 + $0x18] sm:$0xff]
    %v52 = vld [vmem:[#allocation5 + $0x20] sm:$0xff]
    %v53 = vld [vmem:[#allocation5 + $0x28] sm:$0xff]
    %v54 = vld [vmem:[#allocation5 + $0x30] sm:$0xff]
    %v55 = vld [vmem:[#allocation5 + $0x38] sm:$0xff]
    %v56 = vxor.u32 %v48, 2147483648
    %v57 = vxor.u32 %v49, 2147483648
    %v58 = vxor.u32 %v50, 2147483648
    %v59 = vxor.u32 %v51, 2147483648
    %v60 = vxor.u32 %v52, 2147483648
    %v61 = vxor.u32 %v53, 2147483648
    %v62 = vxor.u32 %v54, 2147483648
    %v63 = vxor.u32 %v55, 2147483648
    %v64 = vmul.f32 %v56, 1.442695
    %v65 = vpow.pop %v64
    %v66 = vmul.f32 %v57, 1.442695
    %v67 = vpow.pop %v66
    %v68 = vmul.f32 %v58, 1.442695
    %v69 = vpow.pop %v68
    %v70 = vmul.f32 %v59, 1.442695
    %v71 = vpow.pop %v70
    %v72 = vmul.f32 %v60, 1.442695
    %v73 = vpow.pop %v72
    %v74 = vmul.f32 %v61, 1.442695
    %v75 = vpow.pop %v74
    %v76 = vmul.f32 %v62, 1.442695
    %v77 = vpow.pop %v76
    %v78 = vmul.f32 %v63, 1.442695
    %v79 = vpow.pop %v78
    %v80 = vadd.f32 %v65, 1.0
    %v81 = vadd.f32 %v67, 1.0
    %v82 = vadd.f32 %v69, 1.0
    %v83 = vadd.f32 %v71, 1.0
    %v84 = vadd.f32 %v73, 1.0
    %v85 = vadd.f32 %v75, 1.0
    %v86 = vadd.f32 %v77, 1.0
    %v87 = vadd.f32 %v79, 1.0
    %v88 = vrcp.pop %v80
    %v89 = vmul.f32 1.0, %v88
    %v90 = vrcp.pop %v81
    %v91 = vmul.f32 1.0, %v90
    %v92 = vrcp.pop %v82
    %v93 = vmul.f32 1.0, %v92
    %v94 = vrcp.pop %v83
    %v95 = vmul.f32 1.0, %v94
    %v96 = vrcp.pop %v84
    %v97 = vmul.f32 1.0, %v96
    %v98 = vrcp.pop %v85
    %v99 = vmul.f32 1.0, %v98
    %v100 = vrcp.pop %v86
    %v101 = vmul.f32 1.0, %v100
    %v102 = vrcp.pop %v87
    %v103 = vmul.f32 1.0, %v102
    %v104 = vand.u32 2147483647, %v40
    %v105 = vand.u32 2147483647, %v41
    %v106 = vand.u32 2147483647, %v42
    %v107 = vand.u32 2147483647, %v43
    %v108 = vand.u32 2147483647, %v44
    %v109 = vand.u32 2147483647, %v45
    %v110 = vand.u32 2147483647, %v46
    %v111 = vand.u32 2147483647, %v47
    %v112 = vsub.f32 0.0, %v104
    %v113 = vsub.f32 0.0, %v105
    %v114 = vsub.f32 0.0, %v106
    %v115 = vsub.f32 0.0, %v107
    %v116 = vsub.f32 0.0, %v108
    %v117 = vsub.f32 0.0, %v109
    %v118 = vsub.f32 0.0, %v110
    %v119 = vsub.f32 0.0, %v111
    %v120 = vmul.f32 %v112, 1.442695
    %v121 = vpow.pop %v120
    %v122 = vmul.f32 %v113, 1.442695
    %v123 = vpow.pop %v122
    %v124 = vmul.f32 %v114, 1.442695
    %v125 = vpow.pop %v124
    %v126 = vmul.f32 %v115, 1.442695
    %v127 = vpow.pop %v126
    %v128 = vmul.f32 %v116, 1.442695
    %v129 = vpow.pop %v128
    %v130 = vmul.f32 %v117, 1.442695
    %v131 = vpow.pop %v130
    %v132 = vmul.f32 %v118, 1.442695
    %v133 = vpow.pop %v132
    %v134 = vmul.f32 %v119, 1.442695
    %v135 = vpow.pop %v134
    %v136 = vmax.f32 %v40, 0.0
    %v137 = vmax.f32 %v41, 0.0
    %v138 = vmax.f32 %v42, 0.0
    %v139 = vmax.f32 %v43, 0.0
    %v140 = vmax.f32 %v44, 0.0
    %v141 = vmax.f32 %v45, 0.0
    %v142 = vmax.f32 %v46, 0.0
    %v143 = vmax.f32 %v47, 0.0
    %v144 = vmul.f32 %v40, %v89
    %v145 = vmul.f32 %v41, %v91
    %v146 = vmul.f32 %v42, %v93
    %v147 = vmul.f32 %v43, %v95
    %v148 = vmul.f32 %v44, %v97
    %v149 = vmul.f32 %v45, %v99
    %v150 = vmul.f32 %v46, %v101
    %v151 = vmul.f32 %v47, %v103
    %v152 = vsub.f32 %v136, %v144
    %v153 = vsub.f32 %v137, %v145
    %v154 = vsub.f32 %v138, %v146
    %v155 = vsub.f32 %v139, %v147
    %v156 = vsub.f32 %v140, %v148
    %v157 = vsub.f32 %v141, %v149
    %v158 = vsub.f32 %v142, %v150
    %v159 = vsub.f32 %v143, %v151
    %v160 = vadd.f32 %v121, 1.0
    %v161 = vlog2.pop %v160
    %v162 = vmul.f32 %v161, 0.6931472
    %v163 = vmul.f32 -0.5, %v121
    %v164 = vadd.f32 %v163, 1.0
    %v165 = vmul.f32 %v164, %v121
    %v166 = vand.u32 2147483647, %v121
    %vm167 = vcmp.lt.f32.partialorder %v166, 0.0004427343
    %v168 = vsel %vm167, %v165, %v162
    %v169 = vadd.f32 %v123, 1.0
    %v170 = vlog2.pop %v169
    %v171 = vmul.f32 %v170, 0.6931472
    %v172 = vmul.f32 -0.5, %v123
    %v173 = vadd.f32 %v172, 1.0
    %v174 = vmul.f32 %v173, %v123
    %v175 = vand.u32 2147483647, %v123
    %vm176 = vcmp.lt.f32.partialorder %v175, 0.0004427343
    %v177 = vsel %vm176, %v174, %v171
    %v178 = vadd.f32 %v125, 1.0
    %v179 = vlog2.pop %v178
    %v180 = vmul.f32 %v179, 0.6931472
    %v181 = vmul.f32 -0.5, %v125
    %v182 = vadd.f32 %v181, 1.0
    %v183 = vmul.f32 %v182, %v125
    %v184 = vand.u32 2147483647, %v125
    %vm185 = vcmp.lt.f32.partialorder %v184, 0.0004427343
    %v186 = vsel %vm185, %v183, %v180
    %v187 = vadd.f32 %v127, 1.0
    %v188 = vlog2.pop %v187
    %v189 = vmul.f32 %v188, 0.6931472
    %v190 = vmul.f32 -0.5, %v127
    %v191 = vadd.f32 %v190, 1.0
    %v192 = vmul.f32 %v191, %v127
    %v193 = vand.u32 2147483647, %v127
    %vm194 = vcmp.lt.f32.partialorder %v193, 0.0004427343
    %v195 = vsel %vm194, %v192, %v189
    %v196 = vadd.f32 %v129, 1.0
    %v197 = vlog2.pop %v196
    %v198 = vmul.f32 %v197, 0.6931472
    %v199 = vmul.f32 -0.5, %v129
    %v200 = vadd.f32 %v199, 1.0
    %v201 = vmul.f32 %v200, %v129
    %v202 = vand.u32 2147483647, %v129
    %vm203 = vcmp.lt.f32.partialorder %v202, 0.0004427343
    %v204 = vsel %vm203, %v201, %v198
    %v205 = vadd.f32 %v131, 1.0
    %v206 = vlog2.pop %v205
    %v207 = vmul.f32 %v206, 0.6931472
    %v208 = vmul.f32 -0.5, %v131
    %v209 = vadd.f32 %v208, 1.0
    %v210 = vmul.f32 %v209, %v131
    %v211 = vand.u32 2147483647, %v131
    %vm212 = vcmp.lt.f32.partialorder %v211, 0.0004427343
    %v213 = vsel %vm212, %v210, %v207
    %v214 = vadd.f32 %v133, 1.0
    %v215 = vlog2.pop %v214
    %v216 = vmul.f32 %v215, 0.6931472
    %v217 = vmul.f32 -0.5, %v133
    %v218 = vadd.f32 %v217, 1.0
    %v219 = vmul.f32 %v218, %v133
    %v220 = vand.u32 2147483647, %v133
    %vm221 = vcmp.lt.f32.partialorder %v220, 0.0004427343
    %v222 = vsel %vm221, %v219, %v216
    %v223 = vadd.f32 %v135, 1.0
    %v224 = vlog2.pop %v223
    %v225 = vmul.f32 %v224, 0.6931472
    %v226 = vmul.f32 -0.5, %v135
    %v227 = vadd.f32 %v226, 1.0
    %v228 = vmul.f32 %v227, %v135
    %v229 = vand.u32 2147483647, %v135
    %vm230 = vcmp.lt.f32.partialorder %v229, 0.0004427343
    %v231 = vsel %vm230, %v228, %v225
    %v232 = vadd.f32 %v152, %v168
    %v233 = vadd.f32 %v153, %v177
    %v234 = vadd.f32 %v154, %v186
    %v235 = vadd.f32 %v155, %v195
    %v236 = vadd.f32 %v156, %v204
    %v237 = vadd.f32 %v157, %v213
    %v238 = vadd.f32 %v158, %v222
    %v239 = vadd.f32 %v159, %v231
    %v240 = vadd.f32 %v121, 1.0
    %v241 = vadd.f32 %v123, 1.0
    %v242 = vadd.f32 %v125, 1.0
    %v243 = vadd.f32 %v127, 1.0
    %v244 = vadd.f32 %v129, 1.0
    %v245 = vadd.f32 %v131, 1.0
    %v246 = vadd.f32 %v133, 1.0
    %v247 = vadd.f32 %v135, 1.0
    %v248 = vrcp.pop %v240
    %v249 = vmul.f32 1.0, %v248
    %v250 = vrcp.pop %v241
    %v251 = vmul.f32 1.0, %v250
    %v252 = vrcp.pop %v242
    %v253 = vmul.f32 1.0, %v252
    %v254 = vrcp.pop %v243
    %v255 = vmul.f32 1.0, %v254
    %v256 = vrcp.pop %v244
    %v257 = vmul.f32 1.0, %v256
    %v258 = vrcp.pop %v245
    %v259 = vmul.f32 1.0, %v258
    %v260 = vrcp.pop %v246
    %v261 = vmul.f32 1.0, %v260
    %v262 = vrcp.pop %v247
    %v263 = vmul.f32 1.0, %v262
    %vm264 = vcmp.ge.f32.partialorder %v40, 0.0
    %vm265 = vcmp.ge.f32.partialorder %v41, 0.0
    %vm266 = vcmp.ge.f32.partialorder %v42, 0.0
    %vm267 = vcmp.ge.f32.partialorder %v43, 0.0
    %vm268 = vcmp.ge.f32.partialorder %v44, 0.0
    %vm269 = vcmp.ge.f32.partialorder %v45, 0.0
    %vm270 = vcmp.ge.f32.partialorder %v46, 0.0
    %vm271 = vcmp.ge.f32.partialorder %v47, 0.0
    %v272 = vmul.f32 %v121, %v249
    %v273 = vmul.f32 %v123, %v251
    %v274 = vmul.f32 %v125, %v253
    %v275 = vmul.f32 %v127, %v255
    %v276 = vmul.f32 %v129, %v257
    %v277 = vmul.f32 %v131, %v259
    %v278 = vmul.f32 %v133, %v261
    %v279 = vmul.f32 %v135, %v263
    %v280 = vsel %vm264, %v249, %v272
    %v281 = vsel %vm265, %v251, %v273
    %v282 = vsel %vm266, %v253, %v274
    %v283 = vsel %vm267, %v255, %v275
    %v284 = vsel %vm268, %v257, %v276
    %v285 = vsel %vm269, %v259, %v277
    %v286 = vsel %vm270, %v261, %v278
    %v287 = vsel %vm271, %v263, %v279
    %v288 = vsub.f32 %v280, %v89
    %v289 = vsub.f32 %v281, %v91
    %v290 = vsub.f32 %v282, %v93
    %v291 = vsub.f32 %v283, %v95
    %v292 = vsub.f32 %v284, %v97
    %v293 = vsub.f32 %v285, %v99
    %v294 = vsub.f32 %v286, %v101
    %v295 = vsub.f32 %v287, %v103
    %v296 = vand.u32 2147483647, %v288
    %v297 = vand.u32 2147483647, %v289
    %v298 = vand.u32 2147483647, %v290
    %v299 = vand.u32 2147483647, %v291
    %v300 = vand.u32 2147483647, %v292
    %v301 = vand.u32 2147483647, %v293
    %v302 = vand.u32 2147483647, %v294
    %v303 = vand.u32 2147483647, %v295
    %v304 = vmul.f32 %v232, %v296
    %v305 = vmul.f32 %v233, %v297
    %v306 = vmul.f32 %v234, %v298
    %v307 = vmul.f32 %v235, %v299
    %v308 = vmul.f32 %v236, %v300
    %v309 = vmul.f32 %v237, %v301
    %v310 = vmul.f32 %v238, %v302
    %v311 = vmul.f32 %v239, %v303
    %v312 = vadd.f32 %v304, %v305
    %v313 = vadd.f32 %v312, %v306
    %v314 = vadd.f32 %v313, %v307
    %v315 = vadd.f32 %v314, %v308
    %v316 = vadd.f32 %v315, %v309
    %v317 = vadd.f32 %v316, %v310
    %v318 = vadd.f32 %v317, %v311
    %319 = vadd.xlane.f32.xlu0 %v318
    %v320 = vpop.xlane.xlu0 %319
    %v321 = vrot.slane %v320, 4
    %v322 = vadd.f32 %v320, %v321
    %v323 = vrot.slane %v322, 2
    %v324 = vadd.f32 %v322, %v323
    %v325 = vrot.slane %v324, 1
    %v326 = vadd.f32 %v324, %v325
    %s327 = vtos %v326
    %s328 = scalar_lea.smem [#allocation7], 0
    %329 = sst [smem:[%s328]] %s327
    // Predicated region
    $region18: #{tpu_custom_call.1} parent=1 // pred_check
      _
    $region19: #{tpu_custom_call.1} parent=1 // pred_check_branch
      %331 = sbr.rel (0) target = $region21
    $region20: #{tpu_custom_call.1} parent=1 // pred_region
      %s333 = ssub.s32 16, 16
      %334 = vsyncadd [#allocation4], %s333
      %337 = dma.smem_to_hbm [#allocation7], 16, %s2, [#allocation4]
    $region21: #{tpu_custom_call.1} parent=1 // pred_fallthru
      _
    // Predicated region
    $region22: #{tpu_custom_call.1} parent=1 // pred_check
      _
    $region23: #{tpu_custom_call.1} parent=1 // pred_check_branch
      %339 = sbr.rel (0) target = $region25
    $region24: #{tpu_custom_call.1} parent=1 // pred_region
      %340 = dma.done [#allocation4], 16
    $region25: #{tpu_custom_call.1} parent=1 // pred_fallthru
      _
    %341 = sfence
    %342 = vsyncpa [#allocation3], 1
    %343 = vsyncpa [#allocation6], 1
    %344 = vsyncpa [#allocation4], 1

</llo_original>
